<compile_context>
chip_gen: v7x
topology: tpu7x:2x2x1
jax: 0.10.0
libtpu: 0.0.40
codegen_flags: <defaults>
</compile_context>

<pallas_src>
import functools

import jax
import jax.numpy as jnp
from jax.experimental import pallas as pl
from jax.experimental.pallas import tpu as pltpu


def _round_up(x: int, m: int) -> int:
    return ((x + m - 1) // m) * m


def _pick_tile(padded_dim: int, grain: int, cap: int) -> int:
    """Largest multiple of `grain` <= cap that divides `padded_dim`.

    `padded_dim` is a multiple of `grain`, so `grain` itself always works and
    the chosen tile never overshoots `padded_dim` by more than the grain used
    to pad it.
    """
    best = grain
    t = grain
    limit = min(cap, padded_dim)
    while t <= limit:
        if padded_dim % t == 0:
            best = t
        t += grain
    return best


# --------------------------------------------------------------------------
# Kernels
# --------------------------------------------------------------------------
def _irm_linear_kernel(mul_ref, sum_ref, x_ref, w_ref, b_ref, o_ref):
    """One (tm, tn) output tile, accumulating directly into o_ref over k."""
    k = pl.program_id(2)

    @pl.when(k == 0)
    def _init():
        o_ref[...] = jnp.zeros_like(o_ref)

    # MXU matmul, f32 accumulation into the VMEM-resident output block.
    o_ref[...] += jnp.dot(
        x_ref[...], w_ref[...], preferred_element_type=jnp.float32
    )

    @pl.when(k == pl.num_programs(2) - 1)
    def _finalize():
        # IRM dummy epilogue: (acc + b) * dummy_mul + dummy_sum.
        o_ref[...] = (o_ref[...] + b_ref[...]) * mul_ref[0] + sum_ref[0]


def _irm_small_kernel(x_ref, w_ref, b_ref, o_ref):
    """Single-block fast path; dummy_mul/dummy_sum already folded into w/b."""
    o_ref[...] = (
        jnp.dot(x_ref[...], w_ref[...], preferred_element_type=jnp.float32)
        + b_ref[...]
    )


# --------------------------------------------------------------------------
# Wrapper
# --------------------------------------------------------------------------
@functools.partial(
    jax.jit, static_argnames=("tm_max", "tn_max", "tk_max", "use_bf16")
)
def irm_predict(x, w_t, b, dummy_mul, dummy_sum,
                *, tm_max=1024, tn_max=512, tk_max=512, use_bf16=False):
    """Forward pass of IRM.predict: (x @ w_t + b) * dummy_mul + dummy_sum.

    x:        (batch, in_features) float32
    w_t:      (in_features, out_features) float32  (PyTorch weight transposed)
    b:        (out_features,) float32
    dummy_mul, dummy_sum: scalar float32 (IRM dummy params)
    use_bf16: cast x / w_t to bf16 for the MXU (changes numerics vs fp32).
    """
    batch, in_features = x.shape
    out_features = w_t.shape[1]

    mul = jnp.asarray(dummy_mul, jnp.float32).reshape(())
    add = jnp.asarray(dummy_sum, jnp.float32).reshape(())

    sub = 16 if use_bf16 else 8          # sublane grain for the batch dim
    m_pad = _round_up(batch, sub)
    k_pad = _round_up(in_features, 128)
    n_pad = _round_up(out_features, 128)

    # ---- Small-problem fast path: single block, no grid, no padding --------
    # (tiny IRM heads: grid/pad/SMEM overhead would dominate latency)
    small_bytes = 4 * (m_pad * k_pad + k_pad * n_pad + m_pad * n_pad)
    if small_bytes <= (1 << 20):
        w_eff = (w_t.astype(jnp.float32) * mul)
        b_eff = (b.astype(jnp.float32) * mul + add).reshape(1, out_features)
        return pl.pallas_call(
            _irm_small_kernel,
            out_shape=jax.ShapeDtypeStruct((batch, out_features), jnp.float32),
        )(x.astype(jnp.float32), w_eff, b_eff)

    # ---- Tile sizes: divisors of the grain-padded dims (no overshoot) ------
    tm = _pick_tile(m_pad, sub, tm_max)   # covers whole batch when it fits
    tn = _pick_tile(n_pad, 128, tn_max)
    tk = _pick_tile(k_pad, 128, tk_max)

    # Guarantee >= 2 tiles along a "parallel" axis so one v7x TensorCore
    # doesn't idle when the problem fits a single (tm, tn) output tile.
    if (m_pad // tm == 1) and (n_pad // tn == 1):
        if n_pad >= 2 * 128:
            tn = _pick_tile(n_pad, 128, n_pad // 2)
        elif m_pad >= 2 * sub:
            tm = _pick_tile(m_pad, sub, m_pad // 2)

    # ---- Conditional padding (only for misaligned dims) --------------------
    in_dtype = jnp.bfloat16 if use_bf16 else jnp.float32
    x_c = x.astype(in_dtype)
    w_c = w_t.astype(in_dtype)

    if (m_pad != batch) or (k_pad != in_features):
        x_c = jnp.pad(x_c, ((0, m_pad - batch), (0, k_pad - in_features)))
    if (k_pad != in_features) or (n_pad != out_features):
        w_c = jnp.pad(w_c, ((0, k_pad - in_features), (0, n_pad - out_features)))
    if n_pad != out_features:
        b_c = jnp.pad(b.astype(jnp.float32), (0, n_pad - out_features))
    else:
        b_c = b.astype(jnp.float32)
    b_c = b_c.reshape(1, n_pad)

    grid = (m_pad // tm, n_pad // tn, k_pad // tk)

    # VMEM budget from the actual double-buffered footprint (+ headroom),
    # capped well under v7x's 64 MiB per-TC VMEM.
    in_bytes = 2 if use_bf16 else 4
    tile_bytes = (2 * tm * tk + 2 * tk * tn) * in_bytes \
                 + (2 * tn + 2 * tm * tn) * 4
    vmem_limit = int(min(tile_bytes + (8 << 20), 40 << 20))

    out_padded = pl.pallas_call(
        _irm_linear_kernel,
        out_shape=jax.ShapeDtypeStruct((m_pad, n_pad), jnp.float32),
        grid_spec=pltpu.PrefetchScalarGridSpec(
            num_scalar_prefetch=0,
            grid=grid,
            in_specs=[
                pl.BlockSpec(memory_space=pltpu.MemorySpace.SMEM),   # dummy_mul
                pl.BlockSpec(memory_space=pltpu.MemorySpace.SMEM),   # dummy_sum
                pl.BlockSpec((tm, tk), lambda i, j, k: (i, k)),      # x tile
                pl.BlockSpec((tk, tn), lambda i, j, k: (k, j)),      # w tile
                pl.BlockSpec((1, tn), lambda i, j, k: (0, j)),       # bias tile
            ],
            out_specs=pl.BlockSpec((tm, tn), lambda i, j, k: (i, j)),
        ),
        compiler_params=pltpu.CompilerParams(
            dimension_semantics=("parallel", "parallel", "arbitrary"),
            vmem_limit_bytes=vmem_limit,
        ),
    )(mul.reshape(1), add.reshape(1), x_c, w_c, b_c)

    if (m_pad != batch) or (n_pad != out_features):
        return out_padded[:batch, :out_features]
    return out_padded


def _reference(x, w_t, b, dummy_mul, dummy_sum):
    y = jnp.dot(x, w_t, precision=jax.lax.Precision.HIGHEST)
    return (y + b[None, :]) * dummy_mul + dummy_sum


if __name__ == "__main__":
    key = jax.random.PRNGKey(0)
    k_x, k_w, k_b, k_x2, k_w2, k_b2 = jax.random.split(key, 6)

    # --- Case 1: tiny IRM head (exercises the single-block fast path) -------
    batch, in_features, out_features = 8, 32, 4
    x = jax.random.normal(k_x, (batch, in_features), dtype=jnp.float32)
    bound = 1.0 / (in_features ** 0.5)
    w = jax.random.uniform(k_w, (out_features, in_features),
                           minval=-bound, maxval=bound, dtype=jnp.float32)
    b = jax.random.uniform(k_b, (out_features,),
                           minval=-bound, maxval=bound, dtype=jnp.float32)
    dummy_mul = jnp.float32(1.0)   # IRMLayer.__init__ values
    dummy_sum = jnp.float32(0.0)
    w_t = w.T

    out = jax.block_until_ready(irm_predict(x, w_t, b, dummy_mul, dummy_sum))
    ref = _reference(x, w_t, b, dummy_mul, dummy_sum)
    assert out.shape == (batch, out_features)
    assert jnp.allclose(out, ref, atol=1e-4, rtol=1e-4), "small-path mismatch"

    # --- Case 2: larger, misaligned shapes (tiled grid path + cond. pad) ----
    batch2, in2, out2 = 250, 636, 380
    x2 = jax.random.normal(k_x2, (batch2, in2), dtype=jnp.float32)
    bound2 = 1.0 / (in2 ** 0.5)
    w2 = jax.random.uniform(k_w2, (out2, in2),
                            minval=-bound2, maxval=bound2, dtype=jnp.float32)
    b2 = jax.random.uniform(k_b2, (out2,),
                            minval=-bound2, maxval=bound2, dtype=jnp.float32)
    dm2, ds2 = jnp.float32(0.75), jnp.float32(0.125)   # "trained" dummies

    out2_v = jax.block_until_ready(irm_predict(x2, w2.T, b2, dm2, ds2))
    ref2 = _reference(x2, w2.T, b2, dm2, ds2)
    assert out2_v.shape == (batch2, out2)
    assert jnp.allclose(out2_v, ref2, atol=1e-4, rtol=1e-4), "grid-path mismatch"

    print("KERNEL_OK")
</pallas_src>

<mosaic_0001>
module attributes {stable_mosaic.version = 11 : i64} {
  func.func @_irm_small_kernel(%arg0: memref<8x32xf32, #tpu.memory_space<vmem>>, %arg1: memref<32x4xf32, #tpu.memory_space<vmem>>, %arg2: memref<1x4xf32, #tpu.memory_space<vmem>>, %arg3: memref<8x4xf32, #tpu.memory_space<vmem>>) attributes {dimension_semantics = [], scalar_prefetch = 0 : i64, scratch_operands = 0 : i64, tpu.core_type = #tpu.core_type<tc>} {
    %c0 = arith.constant 0 : index
    %c0_0 = arith.constant 0 : index
    %0 = vector.load %arg0[%c0, %c0_0] : memref<8x32xf32, #tpu.memory_space<vmem>>, vector<8x32xf32>
    %c0_1 = arith.constant 0 : index
    %c0_2 = arith.constant 0 : index
    %1 = vector.load %arg1[%c0_1, %c0_2] : memref<32x4xf32, #tpu.memory_space<vmem>>, vector<32x4xf32>
    %cst = arith.constant dense<0.000000e+00> : vector<8x4xf32>
    %2 = tpu.matmul %0, %1, %cst {dimension_numbers = #tpu.dot_dimension_numbers<[1], [0], [0], [1], [0, 0, 1, 1], [], []>} : vector<8x32xf32>, vector<32x4xf32>, vector<8x4xf32> -> vector<8x4xf32>
    %c0_3 = arith.constant 0 : index
    %c0_4 = arith.constant 0 : index
    %3 = vector.load %arg2[%c0_3, %c0_4] : memref<1x4xf32, #tpu.memory_space<vmem>>, vector<1x4xf32>
    %4 = vector.broadcast %3 : vector<1x4xf32> to vector<8x4xf32>
    %5 = arith.addf %2, %4 : vector<8x4xf32>
    %c0_5 = arith.constant 0 : index
    %c0_6 = arith.constant 0 : index
    %6 = vector.load %arg3[%c0_5, %c0_6] : memref<8x4xf32, #tpu.memory_space<vmem>>, vector<8x4xf32>
    tpu.vector_store %arg3[%c0_5, %c0_6], %5 {strides = array<i32>} : memref<8x4xf32, #tpu.memory_space<vmem>>, vector<8x4xf32>,
    return
  }
}

</mosaic_0001>

<llo_original>
// kernel: irm_predict.1
$region0: #{irm_predict.1}
  #allocation0 [shape = 'u32[]', space=smem, size = 0x4, offset = 0x4, fixed_abs, tag = 'smem constant byte address 0x4 - core index']
  #allocation1 [shape = 'u32[144,128]{1,0:T(1,128)}', space=vmem, size = 0x12000, scoped, tag = 'internal scratch']
  %s0 = inlined_call_operand.vmem [shape: f32[8,32], index: 0, kind: input, shape index: {}]
  %s1 = inlined_call_operand.vmem [shape: f32[32,4], index: 1, kind: input, shape index: {}]
  %s2 = inlined_call_operand.vmem [shape: f32[1,4], index: 2, kind: input, shape index: {}]
  %s3 = inlined_call_operand.vmem [shape: f32[8,4], index: 3, kind: output, shape index: {}]
  %s4 = sld [smem:[#allocation0]]
  $region22: #{irm_predict.1} parent=0
    _
  %s6 = ssub.s32 1, %s4
  %s7 = scalar_select 0, %s6, %s4
  // Predicated region
  $region2: #{irm_predict.1} parent=0 // pred_check
    _
  $region3: #{irm_predict.1} parent=0 // pred_check_branch
    %9 = sbr.rel (0) target = $region5
  $region4: #{irm_predict.1} parent=0 // pred_region
    _
  $region5: #{irm_predict.1} parent=0 // pred_fallthru
    _
  // Predicated region
  $region6: #{irm_predict.1} parent=0 // pred_check
    _
  $region7: #{irm_predict.1} parent=0 // pred_check_branch
    %11 = sbr.rel (0) target = $region9
  $region8: #{irm_predict.1} parent=0 // pred_region
    _
  $region9: #{irm_predict.1} parent=0 // pred_fallthru
    _
  // Predicated region
  $region10: #{irm_predict.1} parent=0 // pred_check
    _
  $region11: #{irm_predict.1} parent=0 // pred_check_branch
    %13 = sbr.rel (0) target = $region13
  $region12: #{irm_predict.1} parent=0 // pred_region
    _
  $region13: #{irm_predict.1} parent=0 // pred_fallthru
    _
  %v14 = vld [vmem:[%s0] sm:$0xff]
  %v15 = vld [vmem:[%s1] sm:$0xff]
  %v16 = vld [vmem:[%s1 + $0x8] sm:$0xff]
  %v17 = vld [vmem:[%s1 + $0x10] sm:$0xff]
  %v18 = vld [vmem:[%s1 + $0x18] sm:$0xff]
  %v19 = vld [vmem:[%s2] sm:$0x1]
  %v21 = vlaneseq
  %v22 = vshrl.u32 %v21, 7
  %v23 = vsub.s32 0, %v22
  %v24 = vrot.slane %v19, %v23
  %vm26 = vcmask 261120
  %v28 = vsel %vm26, %v14, 0
  %30 = vmatprep.subr.mxu0 0.0
  %31 = vmatpush1.msra.mxu0 %v15
  %32 = vmatprep.subr.mxu0 0.0
  %33 = vmatpush1.msra.mxu0 %v16
  %34 = vmatprep.subr.mxu0 0.0
  %35 = vmatpush1.msra.mxu0 %v17
  %36 = vmatprep.subr.mxu0 0.0
  %37 = vmatpush1.msra.mxu0 %v18
  %38 = vmatprep.subr.mxu0 0.0
  %39 = vmatpush1.msra.mxu0 0.0
  %40 = vmatprep.subr.mxu0 0.0
  %41 = vmatpush1.msra.mxu0 0.0
  %42 = vmatprep.subr.mxu0 0.0
  %43 = vmatpush1.msra.mxu0 0.0
  %44 = vmatprep.subr.mxu0 0.0
  %45 = vmatpush1.msra.mxu0 0.0
  %46 = vmatprep.subr.mxu0 0.0
  %47 = vmatpush1.msra.mxu0 0.0
  %48 = vmatprep.subr.mxu0 0.0
  %49 = vmatpush1.msra.mxu0 0.0
  %50 = vmatprep.subr.mxu0 0.0
  %51 = vmatpush1.msra.mxu0 0.0
  %52 = vmatprep.subr.mxu0 0.0
  %53 = vmatpush1.msra.mxu0 0.0
  %54 = vmatprep.subr.mxu0 0.0
  %55 = vmatpush1.msra.mxu0 0.0
  %56 = vmatprep.subr.mxu0 0.0
  %57 = vmatpush1.msra.mxu0 0.0
  %58 = vmatprep.subr.mxu0 0.0
  %59 = vmatpush1.msra.mxu0 0.0
  %60 = vmatprep.subr.mxu0 0.0
  %61 = vmatpush1.msra.mxu0 0.0
  %62 = vmatprep.subr.mxu0 0.0
  %63 = vmatpush1.msra.mxu0 0.0
  %64 = vmatprep.subr.mxu0 0.0
  %65 = vmatpush1.msra.mxu0 0.0
  %66 = vmatprep.subr.mxu0 0.0
  %67 = vmatpush1.msra.mxu0 0.0
  %68 = vmatprep.subr.mxu0 0.0
  %69 = vmatpush1.msra.mxu0 0.0
  %70 = vmatprep.subr.mxu0 0.0
  %71 = vmatpush1.msra.mxu0 0.0
  %72 = vmatprep.subr.mxu0 0.0
  %73 = vmatpush1.msra.mxu0 0.0
  %74 = vmatprep.subr.mxu0 0.0
  %75 = vmatpush1.msra.mxu0 0.0
  %76 = vmatprep.subr.mxu0 0.0
  %77 = vmatpush1.msra.mxu0 0.0
  %78 = vmatprep.subr.mxu0 0.0
  %79 = vmatpush1.msra.mxu0 0.0
  %80 = vmatprep.subr.mxu0 0.0
  %81 = vmatpush1.msra.mxu0 0.0
  %82 = vmatprep.subr.mxu0 0.0
  %83 = vmatpush1.msra.mxu0 0.0
  %84 = vmatprep.subr.mxu0 0.0
  %85 = vmatpush1.msra.mxu0 0.0
  %86 = vmatprep.subr.mxu0 0.0
  %87 = vmatpush1.msra.mxu0 0.0
  %88 = vmatprep.subr.mxu0 0.0
  %89 = vmatpush1.msra.mxu0 0.0
  %90 = vmatprep.subr.mxu0 0.0
  %91 = vmatpush1.msra.mxu0 0.0
  %92 = vmatprep.subr.mxu0 0.0
  %93 = vmatpush1.msra.mxu0 0.0
  %94 = vmatprep.mubr.f32.mxu0 0.0
  %95 = vmatmul.mubr.f32.gmra.mrb[0].mxu0 %v28
  %v96 = vpop.f32.mrb[0].mxu0
  %v97 = vadd.f32 %v24, %v96
  %v98 = vpop.f32.mrb[0].mxu0
  %99 = vdwg.mxu0
  %vm100 = vcmask 31744
  %101 = vst.msk [vmem:[%s3] sm:$0xff] %vm100, %v97
  // Predicated region
  $region14: #{irm_predict.1} parent=0 // pred_check
    _
  $region15: #{irm_predict.1} parent=0 // pred_check_branch
    %103 = sbr.rel (0) target = $region17
  $region16: #{irm_predict.1} parent=0 // pred_region
    _
  $region17: #{irm_predict.1} parent=0 // pred_fallthru
    _
  // Predicated region
  $region18: #{irm_predict.1} parent=0 // pred_check
    _
  $region19: #{irm_predict.1} parent=0 // pred_check_branch
    %105 = sbr.rel (0) target = $region21
  $region20: #{irm_predict.1} parent=0 // pred_region
    _
  $region21: #{irm_predict.1} parent=0 // pred_fallthru
    _

</llo_original>
